<compile_context>
chip_gen: v5e
topology: v5e:2x2
jax: 0.10.0
libtpu: 0.0.40
codegen_flags: <defaults>
</compile_context>

<pallas_src>
import jax
import jax.numpy as jnp
from jax.experimental import pallas as pl
from jax.experimental.pallas import tpu as pltpu


def _odenet_kernel(t_ref, w1_ref, b1_ref, w2_ref, b2_ref, w3_ref, b3_ref,
                   y_ref):
    # fc1 + sin: (H,1) * (1,TB) broadcast -> (H,TB) on the VPU (K=1 dot).
    h = jnp.sin(w1_ref[...] * t_ref[...] + b1_ref[...])
    # fc2 + sin: the only matmul worth the MXU.  (H,H) @ (H,TB) -> (H,TB).
    h = jnp.sin(jnp.dot(w2_ref[...], h,
                        preferred_element_type=jnp.float32) + b2_ref[...])
    # out layer with the frozen M linear folded in: (2,H) @ (H,TB) -> (2,TB).
    y_ref[...] = (jnp.dot(w3_ref[...], h,
                          preferred_element_type=jnp.float32)
                  + b3_ref[...]).astype(y_ref.dtype)


def _round_up(n, m):
    return ((n + m - 1) // m) * m


def _pick_tile(B, tb):
    """Batch tile: multiple of 128 (lane width); >=2 grid steps when possible."""
    b128 = _round_up(max(B, 1), 128)
    TB = min(_round_up(max(tb, 1), 128), b128)
    # Prefer at least 2 grid steps so v7x can use both TensorCores.
    if TB >= b128 and b128 >= 256:
        TB = _round_up(b128 // 2, 128)
    return TB


def odenet_forward(t, params, *, tb=4096):
    """t: (B, 1) float32. Returns (x_N, px_N), each (B, 1)."""
    w1, b1, w2, b2, w3, b3, wm, bm = params
    B = t.shape[0]
    H = w1.shape[1]

    # Fold the frozen M layer into `out` (pure JAX, once, algebraically exact).
    w3f = w3 @ wm                    # (H, 2)
    b3f = b3 @ wm + bm               # (1, 2)

    # Transposed (batch-on-lanes) operands.
    w1t = w1.T                       # (H, 1)
    b1t = b1.T                       # (H, 1)
    w2t = w2.T                       # (H, H)   y^T = W2_in_out^T @ h^T
    b2t = b2.T                       # (H, 1)
    w3t = w3f.T                      # (2, H)
    b3t = b3f.T                      # (2, 1)

    # Batch tiling: TB multiple of 128; pad B up to a multiple of TB.
    TB = _pick_tile(B, tb)
    B_pad = _round_up(B, TB)
    tT = t.T                         # (1, B) lane-dense input
    if B_pad != B:
        tT = jnp.pad(tT, ((0, 0), (0, B_pad - B)))
    grid = (B_pad // TB,)

    const = lambda shape: pl.BlockSpec(shape, lambda i: (0, 0))

    flops = 2 * B_pad * H * (1 + H + 2) + 3 * B_pad * H
    bytes_accessed = 4 * (B_pad + 2 * B_pad
                          + H + H + H * H + H + 2 * H + 2)

    y = pl.pallas_call(
        _odenet_kernel,
        out_shape=jax.ShapeDtypeStruct((2, B_pad), jnp.float32),
        grid=grid,
        in_specs=[
            pl.BlockSpec((1, TB), lambda i: (0, i)),   # t (batch on lanes)
            const((H, 1)),                             # w1^T (resident)
            const((H, 1)),                             # b1^T
            const((H, H)),                             # w2^T
            const((H, 1)),                             # b2^T
            const((2, H)),                             # (w3 @ wm)^T
            const((2, 1)),                             # (b3 @ wm + bm)^T
        ],
        out_specs=pl.BlockSpec((2, TB), lambda i: (0, i)),
        compiler_params=pltpu.CompilerParams(
            dimension_semantics=("parallel",)),
        cost_estimate=pl.CostEstimate(
            flops=flops,
            transcendentals=2 * B_pad * H,
            bytes_accessed=bytes_accessed),
    )(tT, w1t, b1t, w2t, b2t, w3t, b3t)

    # Lane-dense (2, B) output; split the two rows in the wrapper.
    x_N = y[0, :B].reshape(-1, 1)
    px_N = y[1, :B].reshape(-1, 1)
    return x_N, px_N


def init_params(key, hidden=32, hidden_M=2):
    """Deterministic init mimicking torch.nn.Linear default (uniform(+-1/sqrt(fan_in)))."""
    # The torch module only writes the top-left 2x2 of M; identity fold is
    # exact for hidden_M == 2 (the intended configuration).
    assert hidden_M == 2, "M-layer identity fold only reproduces torch for hidden_M == 2"

    def linear(key, fan_in, fan_out):
        kw, kb = jax.random.split(key)
        bound = 1.0 / jnp.sqrt(jnp.float32(fan_in))
        # stored as (in, out) == torch weight transposed
        w = jax.random.uniform(kw, (fan_in, fan_out), jnp.float32, -bound, bound)
        b = jax.random.uniform(kb, (1, fan_out), jnp.float32, -bound, bound)
        return w, b

    k1, k2, k3 = jax.random.split(key, 3)
    w1, b1 = linear(k1, 1, hidden)
    w2, b2 = linear(k2, hidden, hidden)
    w3, b3 = linear(k3, hidden, hidden_M)
    # M layer: frozen identity weights, zero bias (as in the torch __init__).
    wm = jnp.eye(hidden_M, 2, dtype=jnp.float32)   # (hidden_M, 2)
    bm = jnp.zeros((1, 2), jnp.float32)
    return (w1, b1, w2, b2, w3, b3, wm, bm)


def odenet_forward_ref(t, params):
    """Pure-JAX reference for correctness check."""
    w1, b1, w2, b2, w3, b3, wm, bm = params
    h = jnp.sin(t @ w1 + b1)
    h = jnp.sin(h @ w2 + b2)
    h = h @ w3 + b3
    y = h @ wm + bm
    return y[:, 0:1], y[:, 1:2]


if __name__ == "__main__":
    key = jax.random.PRNGKey(0)
    kp, kt, kt2 = jax.random.split(key, 3)

    hidden = 32
    hidden_M = 2
    batch = 8

    params = init_params(kp, hidden=hidden, hidden_M=hidden_M)

    # Small case (single grid step, batch padded up to one 128-lane tile).
    t = jax.random.uniform(kt, (batch, 1), jnp.float32, 0.0, 4.0 * jnp.pi)
    x_N, px_N = odenet_forward(t, params)
    jax.block_until_ready((x_N, px_N))
    x_ref, px_ref = odenet_forward_ref(t, params)
    assert x_N.shape == (batch, 1) and px_N.shape == (batch, 1)
    assert jnp.allclose(x_N, x_ref, atol=1e-5, rtol=1e-5)
    assert jnp.allclose(px_N, px_ref, atol=1e-5, rtol=1e-5)

    # Larger, non-multiple batch: exercises tile rounding, padding, multi-step
    # grid, and the non-aligned user tb path (tb=100 -> rounded to 128).
    batch2 = 300
    t2 = jax.random.uniform(kt2, (batch2, 1), jnp.float32, 0.0, 4.0 * jnp.pi)
    x2, px2 = odenet_forward(t2, params, tb=100)
    jax.block_until_ready((x2, px2))
    x2_ref, px2_ref = odenet_forward_ref(t2, params)
    assert x2.shape == (batch2, 1) and px2.shape == (batch2, 1)
    assert jnp.allclose(x2, x2_ref, atol=1e-5, rtol=1e-5)
    assert jnp.allclose(px2, px2_ref, atol=1e-5, rtol=1e-5)

    print("KERNEL_OK")
</pallas_src>

<mosaic_0001>
module attributes {stable_mosaic.version = 11 : i64} {
  func.func @_odenet_kernel(%arg0: i32, %arg1: memref<1x128xf32, #tpu.memory_space<vmem>>, %arg2: memref<32x1xf32, #tpu.memory_space<vmem>>, %arg3: memref<32x1xf32, #tpu.memory_space<vmem>>, %arg4: memref<32x32xf32, #tpu.memory_space<vmem>>, %arg5: memref<32x1xf32, #tpu.memory_space<vmem>>, %arg6: memref<2x32xf32, #tpu.memory_space<vmem>>, %arg7: memref<2x1xf32, #tpu.memory_space<vmem>>, %arg8: memref<2x128xf32, #tpu.memory_space<vmem>>) attributes {dimension_semantics = [#tpu.dimension_semantics<parallel>], iteration_bounds = array<i64: 1>, scalar_prefetch = 0 : i64, scratch_operands = 0 : i64, tpu.core_type = #tpu.core_type<tc>, window_params = [{transform_indices = @transform_0, window_bounds = array<i64: 1, 128>}, {pipeline_mode = #tpu.pipeline_mode<synchronous>, transform_indices = @transform_1, window_bounds = array<i64: 32, 1>}, {pipeline_mode = #tpu.pipeline_mode<synchronous>, transform_indices = @transform_2, window_bounds = array<i64: 32, 1>}, {pipeline_mode = #tpu.pipeline_mode<synchronous>, transform_indices = @transform_3, window_bounds = array<i64: 32, 32>}, {pipeline_mode = #tpu.pipeline_mode<synchronous>, transform_indices = @transform_4, window_bounds = array<i64: 32, 1>}, {pipeline_mode = #tpu.pipeline_mode<synchronous>, transform_indices = @transform_5, window_bounds = array<i64: 2, 32>}, {pipeline_mode = #tpu.pipeline_mode<synchronous>, transform_indices = @transform_6, window_bounds = array<i64: 2, 1>}, {transform_indices = @transform_7, window_bounds = array<i64: 2, 128>}]} {
    %c0 = arith.constant 0 : index
    %c0_0 = arith.constant 0 : index
    %0 = vector.load %arg2[%c0, %c0_0] : memref<32x1xf32, #tpu.memory_space<vmem>>, vector<32x1xf32>
    %c0_1 = arith.constant 0 : index
    %c0_2 = arith.constant 0 : index
    %1 = vector.load %arg1[%c0_1, %c0_2] : memref<1x128xf32, #tpu.memory_space<vmem>>, vector<1x128xf32>
    %2 = vector.broadcast %0 : vector<32x1xf32> to vector<32x128xf32>
    %3 = vector.broadcast %1 : vector<1x128xf32> to vector<32x128xf32>
    %4 = arith.mulf %2, %3 : vector<32x128xf32>
    %c0_3 = arith.constant 0 : index
    %c0_4 = arith.constant 0 : index
    %5 = vector.load %arg3[%c0_3, %c0_4] : memref<32x1xf32, #tpu.memory_space<vmem>>, vector<32x1xf32>
    %6 = vector.broadcast %5 : vector<32x1xf32> to vector<32x128xf32>
    %7 = arith.addf %4, %6 : vector<32x128xf32>
    %8 = math.sin %7 : vector<32x128xf32>
    %c0_5 = arith.constant 0 : index
    %c0_6 = arith.constant 0 : index
    %9 = vector.load %arg4[%c0_5, %c0_6] : memref<32x32xf32, #tpu.memory_space<vmem>>, vector<32x32xf32>
    %cst = arith.constant dense<0.000000e+00> : vector<32x128xf32>
    %10 = tpu.matmul %9, %8, %cst {dimension_numbers = #tpu.dot_dimension_numbers<[1], [0], [0], [1], [0, 0, 1, 1], [], []>} : vector<32x32xf32>, vector<32x128xf32>, vector<32x128xf32> -> vector<32x128xf32>
    %c0_7 = arith.constant 0 : index
    %c0_8 = arith.constant 0 : index
    %11 = vector.load %arg5[%c0_7, %c0_8] : memref<32x1xf32, #tpu.memory_space<vmem>>, vector<32x1xf32>
    %12 = vector.broadcast %11 : vector<32x1xf32> to vector<32x128xf32>
    %13 = arith.addf %10, %12 : vector<32x128xf32>
    %14 = math.sin %13 : vector<32x128xf32>
    %c0_9 = arith.constant 0 : index
    %c0_10 = arith.constant 0 : index
    %15 = vector.load %arg6[%c0_9, %c0_10] : memref<2x32xf32, #tpu.memory_space<vmem>>, vector<2x32xf32>
    %cst_11 = arith.constant dense<0.000000e+00> : vector<2x128xf32>
    %16 = tpu.matmul %15, %14, %cst_11 {dimension_numbers = #tpu.dot_dimension_numbers<[1], [0], [0], [1], [0, 0, 1, 1], [], []>} : vector<2x32xf32>, vector<32x128xf32>, vector<2x128xf32> -> vector<2x128xf32>
    %c0_12 = arith.constant 0 : index
    %c0_13 = arith.constant 0 : index
    %17 = vector.load %arg7[%c0_12, %c0_13] : memref<2x1xf32, #tpu.memory_space<vmem>>, vector<2x1xf32>
    %18 = vector.broadcast %17 : vector<2x1xf32> to vector<2x128xf32>
    %19 = arith.addf %16, %18 : vector<2x128xf32>
    %c0_14 = arith.constant 0 : index
    %c0_15 = arith.constant 0 : index
    %20 = vector.load %arg8[%c0_14, %c0_15] : memref<2x128xf32, #tpu.memory_space<vmem>>, vector<2x128xf32>
    tpu.vector_store %arg8[%c0_14, %c0_15], %19 {strides = array<i32>} : memref<2x128xf32, #tpu.memory_space<vmem>>, vector<2x128xf32>,
    return
  }
  func.func @transform_0(%arg0: i32) -> (i32, i32) {
    %c0_i32 = arith.constant 0 : i32
    %c0_i32_0 = arith.constant 0 : i32
    return %c0_i32, %arg0 : i32, i32
  }
  func.func @transform_1(%arg0: i32) -> (i32, i32) {
    %c0_i32 = arith.constant 0 : i32
    %c0_i32_0 = arith.constant 0 : i32
    %c0_i32_1 = arith.constant 0 : i32
    return %c0_i32, %c0_i32_0 : i32, i32
  }
  func.func @transform_2(%arg0: i32) -> (i32, i32) {
    %c0_i32 = arith.constant 0 : i32
    %c0_i32_0 = arith.constant 0 : i32
    %c0_i32_1 = arith.constant 0 : i32
    return %c0_i32, %c0_i32_0 : i32, i32
  }
  func.func @transform_3(%arg0: i32) -> (i32, i32) {
    %c0_i32 = arith.constant 0 : i32
    %c0_i32_0 = arith.constant 0 : i32
    %c0_i32_1 = arith.constant 0 : i32
    return %c0_i32, %c0_i32_0 : i32, i32
  }
  func.func @transform_4(%arg0: i32) -> (i32, i32) {
    %c0_i32 = arith.constant 0 : i32
    %c0_i32_0 = arith.constant 0 : i32
    %c0_i32_1 = arith.constant 0 : i32
    return %c0_i32, %c0_i32_0 : i32, i32
  }
  func.func @transform_5(%arg0: i32) -> (i32, i32) {
    %c0_i32 = arith.constant 0 : i32
    %c0_i32_0 = arith.constant 0 : i32
    %c0_i32_1 = arith.constant 0 : i32
    return %c0_i32, %c0_i32_0 : i32, i32
  }
  func.func @transform_6(%arg0: i32) -> (i32, i32) {
    %c0_i32 = arith.constant 0 : i32
    %c0_i32_0 = arith.constant 0 : i32
    %c0_i32_1 = arith.constant 0 : i32
    return %c0_i32, %c0_i32_0 : i32, i32
  }
  func.func @transform_7(%arg0: i32) -> (i32, i32) {
    %c0_i32 = arith.constant 0 : i32
    %c0_i32_0 = arith.constant 0 : i32
    return %c0_i32, %arg0 : i32, i32
  }
}

</mosaic_0001>

<llo_original>
// kernel: tpu_custom_call.1
$region0: #{tpu_custom_call.1}
  #allocation0 [shape = 'u32[]', space=smem, size = 0x4, offset = 0x4, fixed_abs, tag = 'smem constant byte address 0x4 - core index']
  #allocation1 [shape = 'u32[72,128]{1,0:T(1,128)}', space=vmem, size = 0x9000, scoped, tag = 'internal scratch']
  %s0 = inlined_call_operand.vmem [shape: f32[1,128], index: 0, kind: input, shape index: {}]
  %s1 = inlined_call_operand.vmem [shape: f32[32,1], index: 1, kind: input, shape index: {}]
  %s2 = inlined_call_operand.vmem [shape: f32[32,1], index: 2, kind: input, shape index: {}]
  %s3 = inlined_call_operand.vmem [shape: f32[32,32], index: 3, kind: input, shape index: {}]
  %s4 = inlined_call_operand.vmem [shape: f32[32,1], index: 4, kind: input, shape index: {}]
  %s5 = inlined_call_operand.vmem [shape: f32[2,32], index: 5, kind: input, shape index: {}]
  %s6 = inlined_call_operand.vmem [shape: f32[2,1], index: 6, kind: input, shape index: {}]
  %s7 = inlined_call_operand.hbm [shape: f32[2,128], index: 7, kind: output, shape index: {}]
  %s8 = sld [smem:[#allocation0]]
  $region38: #{tpu_custom_call.1} parent=0
    _
  %s10 = ssub.s32 1, %s8
  %s11 = scalar_select 0, %s10, %s8
  $region1: #{tpu_custom_call.1} parent=0
    #allocation2 [shape = 'u8[1024]{0}', space=vmem, size = 0x400, scoped, tag = 'output window, operand 0, single buffered']
    #allocation3 [shape = 's32[1]{0}', space=sflag, size = 0x4, scoped, tag = 'scoped memory for tpu_custom_call.1']
    %12 = vsyncpa [#allocation3], 0
    // Predicated region
    $region2: #{tpu_custom_call.1} parent=1 // pred_check
      _
    $region3: #{tpu_custom_call.1} parent=1 // pred_check_branch
      %14 = sbr.rel (0) target = $region5
    $region4: #{tpu_custom_call.1} parent=1 // pred_region
      _
    $region5: #{tpu_custom_call.1} parent=1 // pred_fallthru
      _
    // Predicated region
    $region6: #{tpu_custom_call.1} parent=1 // pred_check
      _
    $region7: #{tpu_custom_call.1} parent=1 // pred_check_branch
      %16 = sbr.rel (0) target = $region9
    $region8: #{tpu_custom_call.1} parent=1 // pred_region
      _
    $region9: #{tpu_custom_call.1} parent=1 // pred_fallthru
      _
    // Predicated region
    $region10: #{tpu_custom_call.1} parent=1 // pred_check
      _
    $region11: #{tpu_custom_call.1} parent=1 // pred_check_branch
      %18 = sbr.rel (0) target = $region13
    $region12: #{tpu_custom_call.1} parent=1 // pred_region
      _
    $region13: #{tpu_custom_call.1} parent=1 // pred_fallthru
      _
    // Predicated region
    $region14: #{tpu_custom_call.1} parent=1 // pred_check
      _
    $region15: #{tpu_custom_call.1} parent=1 // pred_check_branch
      %20 = sbr.rel (0) target = $region17
    $region16: #{tpu_custom_call.1} parent=1 // pred_region
      _
    $region17: #{tpu_custom_call.1} parent=1 // pred_fallthru
      _
    // Predicated region
    $region18: #{tpu_custom_call.1} parent=1 // pred_check
      _
    $region19: #{tpu_custom_call.1} parent=1 // pred_check_branch
      %22 = sbr.rel (0) target = $region21
    $region20: #{tpu_custom_call.1} parent=1 // pred_region
      _
    $region21: #{tpu_custom_call.1} parent=1 // pred_fallthru
      _
    // Predicated region
    $region22: #{tpu_custom_call.1} parent=1 // pred_check
      _
    $region23: #{tpu_custom_call.1} parent=1 // pred_check_branch
      %24 = sbr.rel (0) target = $region25
    $region24: #{tpu_custom_call.1} parent=1 // pred_region
      _
    $region25: #{tpu_custom_call.1} parent=1 // pred_fallthru
      _
    // Predicated region
    $region26: #{tpu_custom_call.1} parent=1 // pred_check
      _
    $region27: #{tpu_custom_call.1} parent=1 // pred_check_branch
      %26 = sbr.rel (0) target = $region29
    $region28: #{tpu_custom_call.1} parent=1 // pred_region
      _
    $region29: #{tpu_custom_call.1} parent=1 // pred_fallthru
      _
    %v27 = vld [vmem:[%s1] sm:$0xff]
    %v28 = vld [vmem:[%s1 + $0x8] sm:$0xff]
    %v29 = vld [vmem:[%s1 + $0x10] sm:$0xff]
    %v30 = vld [vmem:[%s1 + $0x18] sm:$0xff]
    %v31 = vld [vmem:[%s0] sm:$0x1]
    %33 = vset.pattern.permute.xlu0 0
    %34 = vperm.xlu0 %33, %v27
    %v35 = vpop.permute.xlu0 %34
    %38 = vset.pattern.permute.xlu0 0
    %39 = vperm.xlu0 %38, %v28
    %v40 = vpop.permute.xlu0 %39
    %43 = vset.pattern.permute.xlu0 0
    %44 = vperm.xlu0 %43, %v29
    %v45 = vpop.permute.xlu0 %44
    %48 = vset.pattern.permute.xlu0 0
    %49 = vperm.xlu0 %48, %v30
    %v50 = vpop.permute.xlu0 %49
    %v53 = vperm.slane %v31, 0
    %v55 = vmul.f32 %v35, %v53
    %v56 = vmul.f32 %v40, %v53
    %v57 = vmul.f32 %v45, %v53
    %v58 = vmul.f32 %v50, %v53
    %v59 = vld [vmem:[%s2] sm:$0xff]
    %v60 = vld [vmem:[%s2 + $0x8] sm:$0xff]
    %v61 = vld [vmem:[%s2 + $0x10] sm:$0xff]
    %v62 = vld [vmem:[%s2 + $0x18] sm:$0xff]
    %64 = vset.pattern.permute.xlu0 0
    %65 = vperm.xlu0 %64, %v59
    %v66 = vpop.permute.xlu0 %65
    %69 = vset.pattern.permute.xlu0 0
    %70 = vperm.xlu0 %69, %v60
    %v71 = vpop.permute.xlu0 %70
    %74 = vset.pattern.permute.xlu0 0
    %75 = vperm.xlu0 %74, %v61
    %v76 = vpop.permute.xlu0 %75
    %79 = vset.pattern.permute.xlu0 0
    %80 = vperm.xlu0 %79, %v62
    %v81 = vpop.permute.xlu0 %80
    %v83 = vadd.f32 %v55, %v66
    %v84 = vadd.f32 %v56, %v71
    %v85 = vadd.f32 %v57, %v76
    %v86 = vadd.f32 %v58, %v81
    %v87 = vand.u32 2147483647, %v83
    %vm88 = vcmp.le.f32.partialorder %v87, 0.7853982
    %vm89 = vcmp.lt.s32.totalorder %v83, 0
    %v90 = vand.u32 %v83, 2139095040
    %v91 = vshrl.u32 %v90, 23
    %v92 = vsub.s32 %v91, 127
    %v93 = vand.u32 2147483647, %v83
    %v94 = vand.u32 %v93, 8388607
    %v95 = vor.u32 %v94, 8388608
    %v96 = vsub.s32 0, %v95
    %v97 = vadd.s32 %v92, 1
    %vm98 = vcmp.gt.s32.totalorder %v97, 0
    %v99 = vsel %vm98, %v97, 0
    %v100 = vshrl.u32 %v99, 5
    %v101 = vand.u32 %v99, 31
    %v102 = vsub.s32 32, %v101
    %v103 = vshrl.u32 683565275, %v102
    %v104 = vshll.u32 683565275, %v101
    %v105 = vshrl.u32 2475754826, %v102
    %v106 = vor.u32 %v104, %v105
    %v107 = vshll.u32 2475754826, %v101
    %v108 = vshrl.u32 2131351028, %v102
    %v109 = vor.u32 %v107, %v108
    %v110 = vshll.u32 2131351028, %v101
    %v111 = vshrl.u32 2102212464, %v102
    %v112 = vor.u32 %v110, %v111
    %v113 = vshll.u32 2102212464, %v101
    %v114 = vshrl.u32 920167782, %v102
    %v115 = vor.u32 %v113, %v114
    %v116 = vshll.u32 920167782, %v101
    %v117 = vshrl.u32 1326507024, %v102
    %v118 = vor.u32 %v116, %v117
    %vm119 = vcmp.lt.s32.totalorder %v100, 1
    %vm120 = vcmp.lt.s32.totalorder %v100, 2
    %vm121 = vcmp.lt.s32.totalorder %v100, 3
    %vm122 = vcmp.lt.s32.totalorder %v100, 4
    %v123 = vsel %vm119, %v103, %v106
    %v124 = vsel %vm122, %v112, 2102212464
    %v125 = vsel %vm121, %v109, %v124
    %v126 = vsel %vm120, %v123, %v125
    %v127 = vsel %vm119, %v106, %v109
    %v128 = vsel %vm122, %v115, 920167782
    %v129 = vsel %vm121, %v112, %v128
    %v130 = vsel %vm120, %v127, %v129
    %v131 = vsel %vm119, %v109, %v112
    %v132 = vsel %vm122, %v118, 1326507024
    %v133 = vsel %vm121, %v115, %v132
    %v134 = vsel %vm120, %v131, %v133
    %v135 = vshll.u32 %v95, 8
    %v136 = vand.u32 %v135, 65535
    %v137 = vshrl.u32 %v135, 16
    %v138 = vand.u32 %v134, 65535
    %v139 = vshrl.u32 %v134, 16
    %v140 = vmul.u32 %v136, %v138
    %v141 = vmul.u32 %v136, %v139
    %v142 = vmul.u32 %v137, %v138
    %v143 = vmul.u32 %v137, %v139
    %v144 = vshll.u32 %v141, 16
    %v145 = vshrl.u32 %v141, 16
    %v146 = vshll.u32 %v142, 16
    %v147 = vshrl.u32 %v142, 16
    %vm148 = vc.u32 %v140, %v144
    %v149 = vsel %vm148, 1, 0
    %v150 = vadd.s32 %v140, %v144
    %v151 = vadd.s32 %v143, %v149
    %vm152 = vc.u32 %v150, %v146
    %v153 = vsel %vm152, 1, 0
    %v154 = vadd.s32 %v150, %v146
    %v155 = vadd.s32 %v151, %v153
    %v156 = vadd.s32 %v155, %v145
    %v157 = vadd.s32 %v156, %v147
    %v158 = vand.u32 %v135, 65535
    %v159 = vshrl.u32 %v135, 16
    %v160 = vand.u32 %v130, 65535
    %v161 = vshrl.u32 %v130, 16
    %v162 = vmul.u32 %v158, %v160
    %v163 = vmul.u32 %v158, %v161
    %v164 = vmul.u32 %v159, %v160
    %v165 = vmul.u32 %v159, %v161
    %v166 = vshll.u32 %v163, 16
    %v167 = vshrl.u32 %v163, 16
    %v168 = vshll.u32 %v164, 16
    %v169 = vshrl.u32 %v164, 16
    %vm170 = vc.u32 %v162, %v166
    %v171 = vsel %vm170, 1, 0
    %v172 = vadd.s32 %v162, %v166
    %v173 = vadd.s32 %v165, %v171
    %vm174 = vc.u32 %v172, %v168
    %v175 = vsel %vm174, 1, 0
    %v176 = vadd.s32 %v172, %v168
    %v177 = vadd.s32 %v173, %v175
    %v178 = vadd.s32 %v177, %v167
    %v179 = vadd.s32 %v178, %v169
    %v180 = vmul.u32 %v135, %v126
    %v181 = vadd.s32 %v157, %v176
    %vm182 = vc.u32 %v157, %v176
    %v183 = vadd.s32 %v179, 1
    %v184 = vsel %vm182, %v183, %v179
    %v185 = vadd.s32 %v180, %v184
    %v186 = vadd.s32 %v185, 536870912
    %v187 = vshrl.u32 %v186, 30
    %v188 = vshll.u32 %v187, 30
    %v189 = vsub.s32 %v185, %v188
    %vm190 = vcmp.lt.s32.totalorder %v189, 0
    %v191 = vsub.s32 0, %v189
    %v192 = vsel %vm190, %v191, %v189
    %v193 = vclz %v192
    %v194 = vsub.s32 %v193, 2
    %vm195 = vcmp.gt.s32.totalorder 0, %v194
    %v196 = vsel %vm195, 0, %v194
    %v197 = vsub.s32 32, %v196
    %v198 = vshll.u32 %v189, %v196
    %v199 = vshrl.u32 %v181, %v197
    %v200 = vor.u32 %v198, %v199
    %v201 = vsub.s32 4294967266, %v196
    %v202 = vadd.s32 %v201, 127
    %v203 = vshll.u32 %v202, 23
    %v204 = vor.u32 4788187, %v203
    %v205 = vand.u32 2147483647, %v204
    %v207 = vcvt.s32.f32 %v200
    %v208 = vmul.f32 %v207, %v205
    %v209 = vxor.u32 %v208, 2147483648
    %v210 = vsel %vm89, %v209, %v208
    %v211 = vsub.s32 4, %v187
    %v212 = vsel %vm89, %v211, %v187
    %v213 = vsel %vm88, %v83, %v210
    %v214 = vsel %vm88, 0, %v212
    %v215 = vmul.f32 %v213, %v213
    %v216 = vmul.f32 %v215, -0.001358992
    %v217 = vadd.f32 %v216, 0.041655596
    %v218 = vmul.f32 %v215, %v217
    %v219 = vadd.f32 %v218, -0.4999988
    %v220 = vmul.f32 %v215, %v219
    %v221 = vadd.f32 1.0, %v220
    %v222 = vmul.f32 %v213, %v213
    %v223 = vmul.f32 %v222, -0.00019511016
    %v224 = vadd.f32 %v223, 0.008332121
    %v225 = vmul.f32 %v222, %v224
    %v226 = vadd.f32 %v225, -0.16666654
    %v227 = vmul.f32 %v222, %v226
    %v228 = vadd.f32 %v227, 1.0
    %v229 = vmul.f32 %v228, %v213
    %vm230 = vweird.f32 %v83
    %v231 = vadd.s32 %v214, 3
    %v232 = vand.u32 %v231, 3
    %vm233 = vcmp.lt.s32.totalorder %v232, 2
    %vm234 = vcmp.eq.s32.totalorder %v232, 0
    %v235 = vxor.u32 %v229, 2147483648
    %v236 = vsel %vm234, %v221, %v235
    %vm237 = vcmp.eq.s32.totalorder %v232, 2
    %v238 = vxor.u32 %v221, 2147483648
    %v239 = vsel %vm237, %v238, %v229
    %v240 = vsel %vm233, %v236, %v239
    %v241 = vsel %vm230, nan, %v240
    %v242 = vand.u32 2147483647, %v84
    %vm243 = vcmp.le.f32.partialorder %v242, 0.7853982
    %vm244 = vcmp.lt.s32.totalorder %v84, 0
    %v245 = vand.u32 %v84, 2139095040
    %v246 = vshrl.u32 %v245, 23
    %v247 = vsub.s32 %v246, 127
    %v248 = vand.u32 2147483647, %v84
    %v249 = vand.u32 %v248, 8388607
    %v250 = vor.u32 %v249, 8388608
    %v251 = vsub.s32 0, %v250
    %v252 = vadd.s32 %v247, 1
    %vm253 = vcmp.gt.s32.totalorder %v252, 0
    %v254 = vsel %vm253, %v252, 0
    %v255 = vshrl.u32 %v254, 5
    %v256 = vand.u32 %v254, 31
    %v257 = vsub.s32 32, %v256
    %v258 = vshrl.u32 683565275, %v257
    %v259 = vshll.u32 683565275, %v256
    %v260 = vshrl.u32 2475754826, %v257
    %v261 = vor.u32 %v259, %v260
    %v262 = vshll.u32 2475754826, %v256
    %v263 = vshrl.u32 2131351028, %v257
    %v264 = vor.u32 %v262, %v263
    %v265 = vshll.u32 2131351028, %v256
    %v266 = vshrl.u32 2102212464, %v257
    %v267 = vor.u32 %v265, %v266
    %v268 = vshll.u32 2102212464, %v256
    %v269 = vshrl.u32 920167782, %v257
    %v270 = vor.u32 %v268, %v269
    %v271 = vshll.u32 920167782, %v256
    %v272 = vshrl.u32 1326507024, %v257
    %v273 = vor.u32 %v271, %v272
    %vm274 = vcmp.lt.s32.totalorder %v255, 1
    %vm275 = vcmp.lt.s32.totalorder %v255, 2
    %vm276 = vcmp.lt.s32.totalorder %v255, 3
    %vm277 = vcmp.lt.s32.totalorder %v255, 4
    %v278 = vsel %vm274, %v258, %v261
    %v279 = vsel %vm277, %v267, 2102212464
    %v280 = vsel %vm276, %v264, %v279
    %v281 = vsel %vm275, %v278, %v280
    %v282 = vsel %vm274, %v261, %v264
    %v283 = vsel %vm277, %v270, 920167782
    %v284 = vsel %vm276, %v267, %v283
    %v285 = vsel %vm275, %v282, %v284
    %v286 = vsel %vm274, %v264, %v267
    %v287 = vsel %vm277, %v273, 1326507024
    %v288 = vsel %vm276, %v270, %v287
    %v289 = vsel %vm275, %v286, %v288
    %v290 = vshll.u32 %v250, 8
    %v291 = vand.u32 %v290, 65535
    %v292 = vshrl.u32 %v290, 16
    %v293 = vand.u32 %v289, 65535
    %v294 = vshrl.u32 %v289, 16
    %v295 = vmul.u32 %v291, %v293
    %v296 = vmul.u32 %v291, %v294
    %v297 = vmul.u32 %v292, %v293
    %v298 = vmul.u32 %v292, %v294
    %v299 = vshll.u32 %v296, 16
    %v300 = vshrl.u32 %v296, 16
    %v301 = vshll.u32 %v297, 16
    %v302 = vshrl.u32 %v297, 16
    %vm303 = vc.u32 %v295, %v299
    %v304 = vsel %vm303, 1, 0
    %v305 = vadd.s32 %v295, %v299
    %v306 = vadd.s32 %v298, %v304
    %vm307 = vc.u32 %v305, %v301
    %v308 = vsel %vm307, 1, 0
    %v309 = vadd.s32 %v305, %v301
    %v310 = vadd.s32 %v306, %v308
    %v311 = vadd.s32 %v310, %v300
    %v312 = vadd.s32 %v311, %v302
    %v313 = vand.u32 %v290, 65535
    %v314 = vshrl.u32 %v290, 16
    %v315 = vand.u32 %v285, 65535
    %v316 = vshrl.u32 %v285, 16
    %v317 = vmul.u32 %v313, %v315
    %v318 = vmul.u32 %v313, %v316
    %v319 = vmul.u32 %v314, %v315
    %v320 = vmul.u32 %v314, %v316
    %v321 = vshll.u32 %v318, 16
    %v322 = vshrl.u32 %v318, 16
    %v323 = vshll.u32 %v319, 16
    %v324 = vshrl.u32 %v319, 16
    %vm325 = vc.u32 %v317, %v321
    %v326 = vsel %vm325, 1, 0
    %v327 = vadd.s32 %v317, %v321
    %v328 = vadd.s32 %v320, %v326
    %vm329 = vc.u32 %v327, %v323
    %v330 = vsel %vm329, 1, 0
    %v331 = vadd.s32 %v327, %v323
    %v332 = vadd.s32 %v328, %v330
    %v333 = vadd.s32 %v332, %v322
    %v334 = vadd.s32 %v333, %v324
    %v335 = vmul.u32 %v290, %v281
    %v336 = vadd.s32 %v312, %v331
    %vm337 = vc.u32 %v312, %v331
    %v338 = vadd.s32 %v334, 1
    %v339 = vsel %vm337, %v338, %v334
    %v340 = vadd.s32 %v335, %v339
    %v341 = vadd.s32 %v340, 536870912
    %v342 = vshrl.u32 %v341, 30
    %v343 = vshll.u32 %v342, 30
    %v344 = vsub.s32 %v340, %v343
    %vm345 = vcmp.lt.s32.totalorder %v344, 0
    %v346 = vsub.s32 0, %v344
    %v347 = vsel %vm345, %v346, %v344
    %v348 = vclz %v347
    %v349 = vsub.s32 %v348, 2
    %vm350 = vcmp.gt.s32.totalorder 0, %v349
    %v351 = vsel %vm350, 0, %v349
    %v352 = vsub.s32 32, %v351
    %v353 = vshll.u32 %v344, %v351
    %v354 = vshrl.u32 %v336, %v352
    %v355 = vor.u32 %v353, %v354
    %v356 = vsub.s32 4294967266, %v351
    %v357 = vadd.s32 %v356, 127
    %v358 = vshll.u32 %v357, 23
    %v359 = vor.u32 4788187, %v358
    %v360 = vand.u32 2147483647, %v359
    %v362 = vcvt.s32.f32 %v355
    %v363 = vmul.f32 %v362, %v360
    %v364 = vxor.u32 %v363, 2147483648
    %v365 = vsel %vm244, %v364, %v363
    %v366 = vsub.s32 4, %v342
    %v367 = vsel %vm244, %v366, %v342
    %v368 = vsel %vm243, %v84, %v365
    %v369 = vsel %vm243, 0, %v367
    %v370 = vmul.f32 %v368, %v368
    %v371 = vmul.f32 %v370, -0.001358992
    %v372 = vadd.f32 %v371, 0.041655596
    %v373 = vmul.f32 %v370, %v372
    %v374 = vadd.f32 %v373, -0.4999988
    %v375 = vmul.f32 %v370, %v374
    %v376 = vadd.f32 1.0, %v375
    %v377 = vmul.f32 %v368, %v368
    %v378 = vmul.f32 %v377, -0.00019511016
    %v379 = vadd.f32 %v378, 0.008332121
    %v380 = vmul.f32 %v377, %v379
    %v381 = vadd.f32 %v380, -0.16666654
    %v382 = vmul.f32 %v377, %v381
    %v383 = vadd.f32 %v382, 1.0
    %v384 = vmul.f32 %v383, %v368
    %vm385 = vweird.f32 %v84
    %v386 = vadd.s32 %v369, 3
    %v387 = vand.u32 %v386, 3
    %vm388 = vcmp.lt.s32.totalorder %v387, 2
    %vm389 = vcmp.eq.s32.totalorder %v387, 0
    %v390 = vxor.u32 %v384, 2147483648
    %v391 = vsel %vm389, %v376, %v390
    %vm392 = vcmp.eq.s32.totalorder %v387, 2
    %v393 = vxor.u32 %v376, 2147483648
    %v394 = vsel %vm392, %v393, %v384
    %v395 = vsel %vm388, %v391, %v394
    %v396 = vsel %vm385, nan, %v395
    %v397 = vand.u32 2147483647, %v85
    %vm398 = vcmp.le.f32.partialorder %v397, 0.7853982
    %vm399 = vcmp.lt.s32.totalorder %v85, 0
    %v400 = vand.u32 %v85, 2139095040
    %v401 = vshrl.u32 %v400, 23
    %v402 = vsub.s32 %v401, 127
    %v403 = vand.u32 2147483647, %v85
    %v404 = vand.u32 %v403, 8388607
    %v405 = vor.u32 %v404, 8388608
    %v406 = vsub.s32 0, %v405
    %v407 = vadd.s32 %v402, 1
    %vm408 = vcmp.gt.s32.totalorder %v407, 0
    %v409 = vsel %vm408, %v407, 0
    %v410 = vshrl.u32 %v409, 5
    %v411 = vand.u32 %v409, 31
    %v412 = vsub.s32 32, %v411
    %v413 = vshrl.u32 683565275, %v412
    %v414 = vshll.u32 683565275, %v411
    %v415 = vshrl.u32 2475754826, %v412
    %v416 = vor.u32 %v414, %v415
    %v417 = vshll.u32 2475754826, %v411
    %v418 = vshrl.u32 2131351028, %v412
    %v419 = vor.u32 %v417, %v418
    %v420 = vshll.u32 2131351028, %v411
    %v421 = vshrl.u32 2102212464, %v412
    %v422 = vor.u32 %v420, %v421
    %v423 = vshll.u32 2102212464, %v411
    %v424 = vshrl.u32 920167782, %v412
    %v425 = vor.u32 %v423, %v424
    %v426 = vshll.u32 920167782, %v411
    %v427 = vshrl.u32 1326507024, %v412
    %v428 = vor.u32 %v426, %v427
    %vm429 = vcmp.lt.s32.totalorder %v410, 1
    %vm430 = vcmp.lt.s32.totalorder %v410, 2
    %vm431 = vcmp.lt.s32.totalorder %v410, 3
    %vm432 = vcmp.lt.s32.totalorder %v410, 4
    %v433 = vsel %vm429, %v413, %v416
    %v434 = vsel %vm432, %v422, 2102212464
    %v435 = vsel %vm431, %v419, %v434
    %v436 = vsel %vm430, %v433, %v435
    %v437 = vsel %vm429, %v416, %v419
    %v438 = vsel %vm432, %v425, 920167782
    %v439 = vsel %vm431, %v422, %v438
    %v440 = vsel %vm430, %v437, %v439
    %v441 = vsel %vm429, %v419, %v422
    %v442 = vsel %vm432, %v428, 1326507024
    %v443 = vsel %vm431, %v425, %v442
    %v444 = vsel %vm430, %v441, %v443
    %v445 = vshll.u32 %v405, 8
    %v446 = vand.u32 %v445, 65535
    %v447 = vshrl.u32 %v445, 16
    %v448 = vand.u32 %v444, 65535
    %v449 = vshrl.u32 %v444, 16
    %v450 = vmul.u32 %v446, %v448
    %v451 = vmul.u32 %v446, %v449
    %v452 = vmul.u32 %v447, %v448
    %v453 = vmul.u32 %v447, %v449
    %v454 = vshll.u32 %v451, 16
    %v455 = vshrl.u32 %v451, 16
    %v456 = vshll.u32 %v452, 16
    %v457 = vshrl.u32 %v452, 16
    %vm458 = vc.u32 %v450, %v454
    %v459 = vsel %vm458, 1, 0
    %v460 = vadd.s32 %v450, %v454
    %v461 = vadd.s32 %v453, %v459
    %vm462 = vc.u32 %v460, %v456
    %v463 = vsel %vm462, 1, 0
    %v464 = vadd.s32 %v460, %v456
    %v465 = vadd.s32 %v461, %v463
    %v466 = vadd.s32 %v465, %v455
    %v467 = vadd.s32 %v466, %v457
    %v468 = vand.u32 %v445, 65535
    %v469 = vshrl.u32 %v445, 16
    %v470 = vand.u32 %v440, 65535
    %v471 = vshrl.u32 %v440, 16
    %v472 = vmul.u32 %v468, %v470
    %v473 = vmul.u32 %v468, %v471
    %v474 = vmul.u32 %v469, %v470
    %v475 = vmul.u32 %v469, %v471
    %v476 = vshll.u32 %v473, 16
    %v477 = vshrl.u32 %v473, 16
    %v478 = vshll.u32 %v474, 16
    %v479 = vshrl.u32 %v474, 16
    %vm480 = vc.u32 %v472, %v476
    %v481 = vsel %vm480, 1, 0
    %v482 = vadd.s32 %v472, %v476
    %v483 = vadd.s32 %v475, %v481
    %vm484 = vc.u32 %v482, %v478
    %v485 = vsel %vm484, 1, 0
    %v486 = vadd.s32 %v482, %v478
    %v487 = vadd.s32 %v483, %v485
    %v488 = vadd.s32 %v487, %v477
    %v489 = vadd.s32 %v488, %v479
    %v490 = vmul.u32 %v445, %v436
    %v491 = vadd.s32 %v467, %v486
    %vm492 = vc.u32 %v467, %v486
    %v493 = vadd.s32 %v489, 1
    %v494 = vsel %vm492, %v493, %v489
    %v495 = vadd.s32 %v490, %v494
    %v496 = vadd.s32 %v495, 536870912
    %v497 = vshrl.u32 %v496, 30
    %v498 = vshll.u32 %v497, 30
    %v499 = vsub.s32 %v495, %v498
    %vm500 = vcmp.lt.s32.totalorder %v499, 0
    %v501 = vsub.s32 0, %v499
    %v502 = vsel %vm500, %v501, %v499
    %v503 = vclz %v502
    %v504 = vsub.s32 %v503, 2
    %vm505 = vcmp.gt.s32.totalorder 0, %v504
    %v506 = vsel %vm505, 0, %v504
    %v507 = vsub.s32 32, %v506
    %v508 = vshll.u32 %v499, %v506
    %v509 = vshrl.u32 %v491, %v507
    %v510 = vor.u32 %v508, %v509
    %v511 = vsub.s32 4294967266, %v506
    %v512 = vadd.s32 %v511, 127
    %v513 = vshll.u32 %v512, 23
    %v514 = vor.u32 4788187, %v513
    %v515 = vand.u32 2147483647, %v514
    %v517 = vcvt.s32.f32 %v510
    %v518 = vmul.f32 %v517, %v515
    %v519 = vxor.u32 %v518, 2147483648
    %v520 = vsel %vm399, %v519, %v518
    %v521 = vsub.s32 4, %v497
    %v522 = vsel %vm399, %v521, %v497
    %v523 = vsel %vm398, %v85, %v520
    %v524 = vsel %vm398, 0, %v522
    %v525 = vmul.f32 %v523, %v523
    %v526 = vmul.f32 %v525, -0.001358992
    %v527 = vadd.f32 %v526, 0.041655596
    %v528 = vmul.f32 %v525, %v527
    %v529 = vadd.f32 %v528, -0.4999988
    %v530 = vmul.f32 %v525, %v529
    %v531 = vadd.f32 1.0, %v530
    %v532 = vmul.f32 %v523, %v523
    %v533 = vmul.f32 %v532, -0.00019511016
    %v534 = vadd.f32 %v533, 0.008332121
    %v535 = vmul.f32 %v532, %v534
    %v536 = vadd.f32 %v535, -0.16666654
    %v537 = vmul.f32 %v532, %v536
    %v538 = vadd.f32 %v537, 1.0
    %v539 = vmul.f32 %v538, %v523
    %vm540 = vweird.f32 %v85
    %v541 = vadd.s32 %v524, 3
    %v542 = vand.u32 %v541, 3
    %vm543 = vcmp.lt.s32.totalorder %v542, 2
    %vm544 = vcmp.eq.s32.totalorder %v542, 0
    %v545 = vxor.u32 %v539, 2147483648
    %v546 = vsel %vm544, %v531, %v545
    %vm547 = vcmp.eq.s32.totalorder %v542, 2
    %v548 = vxor.u32 %v531, 2147483648
    %v549 = vsel %vm547, %v548, %v539
    %v550 = vsel %vm543, %v546, %v549
    %v551 = vsel %vm540, nan, %v550
    %v552 = vand.u32 2147483647, %v86
    %vm553 = vcmp.le.f32.partialorder %v552, 0.7853982
    %vm554 = vcmp.lt.s32.totalorder %v86, 0
    %v555 = vand.u32 %v86, 2139095040
    %v556 = vshrl.u32 %v555, 23
    %v557 = vsub.s32 %v556, 127
    %v558 = vand.u32 2147483647, %v86
    %v559 = vand.u32 %v558, 8388607
    %v560 = vor.u32 %v559, 8388608
    %v561 = vsub.s32 0, %v560
    %v562 = vadd.s32 %v557, 1
    %vm563 = vcmp.gt.s32.totalorder %v562, 0
    %v564 = vsel %vm563, %v562, 0
    %v565 = vshrl.u32 %v564, 5
    %v566 = vand.u32 %v564, 31
    %v567 = vsub.s32 32, %v566
    %v568 = vshrl.u32 683565275, %v567
    %v569 = vshll.u32 683565275, %v566
    %v570 = vshrl.u32 2475754826, %v567
    %v571 = vor.u32 %v569, %v570
    %v572 = vshll.u32 2475754826, %v566
    %v573 = vshrl.u32 2131351028, %v567
    %v574 = vor.u32 %v572, %v573
    %v575 = vshll.u32 2131351028, %v566
    %v576 = vshrl.u32 2102212464, %v567
    %v577 = vor.u32 %v575, %v576
    %v578 = vshll.u32 2102212464, %v566
    %v579 = vshrl.u32 920167782, %v567
    %v580 = vor.u32 %v578, %v579
    %v581 = vshll.u32 920167782, %v566
    %v582 = vshrl.u32 1326507024, %v567
    %v583 = vor.u32 %v581, %v582
    %vm584 = vcmp.lt.s32.totalorder %v565, 1
    %vm585 = vcmp.lt.s32.totalorder %v565, 2
    %vm586 = vcmp.lt.s32.totalorder %v565, 3
    %vm587 = vcmp.lt.s32.totalorder %v565, 4
    %v588 = vsel %vm584, %v568, %v571
    %v589 = vsel %vm587, %v577, 2102212464
    %v590 = vsel %vm586, %v574, %v589
    %v591 = vsel %vm585, %v588, %v590
    %v592 = vsel %vm584, %v571, %v574
    %v593 = vsel %vm587, %v580, 920167782
    %v594 = vsel %vm586, %v577, %v593
    %v595 = vsel %vm585, %v592, %v594
    %v596 = vsel %vm584, %v574, %v577
    %v597 = vsel %vm587, %v583, 1326507024
    %v598 = vsel %vm586, %v580, %v597
    %v599 = vsel %vm585, %v596, %v598
    %v600 = vshll.u32 %v560, 8
    %v601 = vand.u32 %v600, 65535
    %v602 = vshrl.u32 %v600, 16
    %v603 = vand.u32 %v599, 65535
    %v604 = vshrl.u32 %v599, 16
    %v605 = vmul.u32 %v601, %v603
    %v606 = vmul.u32 %v601, %v604
    %v607 = vmul.u32 %v602, %v603
    %v608 = vmul.u32 %v602, %v604
    %v609 = vshll.u32 %v606, 16
    %v610 = vshrl.u32 %v606, 16
    %v611 = vshll.u32 %v607, 16
    %v612 = vshrl.u32 %v607, 16
    %vm613 = vc.u32 %v605, %v609
    %v614 = vsel %vm613, 1, 0
    %v615 = vadd.s32 %v605, %v609
    %v616 = vadd.s32 %v608, %v614
    %vm617 = vc.u32 %v615, %v611
    %v618 = vsel %vm617, 1, 0
    %v619 = vadd.s32 %v615, %v611
    %v620 = vadd.s32 %v616, %v618
    %v621 = vadd.s32 %v620, %v610
    %v622 = vadd.s32 %v621, %v612
    %v623 = vand.u32 %v600, 65535
    %v624 = vshrl.u32 %v600, 16
    %v625 = vand.u32 %v595, 65535
    %v626 = vshrl.u32 %v595, 16
    %v627 = vmul.u32 %v623, %v625
    %v628 = vmul.u32 %v623, %v626
    %v629 = vmul.u32 %v624, %v625
    %v630 = vmul.u32 %v624, %v626
    %v631 = vshll.u32 %v628, 16
    %v632 = vshrl.u32 %v628, 16
    %v633 = vshll.u32 %v629, 16
    %v634 = vshrl.u32 %v629, 16
    %vm635 = vc.u32 %v627, %v631
    %v636 = vsel %vm635, 1, 0
    %v637 = vadd.s32 %v627, %v631
    %v638 = vadd.s32 %v630, %v636
    %vm639 = vc.u32 %v637, %v633
    %v640 = vsel %vm639, 1, 0
    %v641 = vadd.s32 %v637, %v633
    %v642 = vadd.s32 %v638, %v640
    %v643 = vadd.s32 %v642, %v632
    %v644 = vadd.s32 %v643, %v634
    %v645 = vmul.u32 %v600, %v591
    %v646 = vadd.s32 %v622, %v641
    %vm647 = vc.u32 %v622, %v641
    %v648 = vadd.s32 %v644, 1
    %v649 = vsel %vm647, %v648, %v644
    %v650 = vadd.s32 %v645, %v649
    %v651 = vadd.s32 %v650, 536870912
    %v652 = vshrl.u32 %v651, 30
    %v653 = vshll.u32 %v652, 30
    %v654 = vsub.s32 %v650, %v653
    %vm655 = vcmp.lt.s32.totalorder %v654, 0
    %v656 = vsub.s32 0, %v654
    %v657 = vsel %vm655, %v656, %v654
    %v658 = vclz %v657
    %v659 = vsub.s32 %v658, 2
    %vm660 = vcmp.gt.s32.totalorder 0, %v659
    %v661 = vsel %vm660, 0, %v659
    %v662 = vsub.s32 32, %v661
    %v663 = vshll.u32 %v654, %v661
    %v664 = vshrl.u32 %v646, %v662
    %v665 = vor.u32 %v663, %v664
    %v666 = vsub.s32 4294967266, %v661
    %v667 = vadd.s32 %v666, 127
    %v668 = vshll.u32 %v667, 23
    %v669 = vor.u32 4788187, %v668
    %v670 = vand.u32 2147483647, %v669
    %v672 = vcvt.s32.f32 %v665
    %v673 = vmul.f32 %v672, %v670
    %v674 = vxor.u32 %v673, 2147483648
    %v675 = vsel %vm554, %v674, %v673
    %v676 = vsub.s32 4, %v652
    %v677 = vsel %vm554, %v676, %v652
    %v678 = vsel %vm553, %v86, %v675
    %v679 = vsel %vm553, 0, %v677
    %v680 = vmul.f32 %v678, %v678
    %v681 = vmul.f32 %v680, -0.001358992
    %v682 = vadd.f32 %v681, 0.041655596
    %v683 = vmul.f32 %v680, %v682
    %v684 = vadd.f32 %v683, -0.4999988
    %v685 = vmul.f32 %v680, %v684
    %v686 = vadd.f32 1.0, %v685
    %v687 = vmul.f32 %v678, %v678
    %v688 = vmul.f32 %v687, -0.00019511016
    %v689 = vadd.f32 %v688, 0.008332121
    %v690 = vmul.f32 %v687, %v689
    %v691 = vadd.f32 %v690, -0.16666654
    %v692 = vmul.f32 %v687, %v691
    %v693 = vadd.f32 %v692, 1.0
    %v694 = vmul.f32 %v693, %v678
    %vm695 = vweird.f32 %v86
    %v696 = vadd.s32 %v679, 3
    %v697 = vand.u32 %v696, 3
    %vm698 = vcmp.lt.s32.totalorder %v697, 2
    %vm699 = vcmp.eq.s32.totalorder %v697, 0
    %v700 = vxor.u32 %v694, 2147483648
    %v701 = vsel %vm699, %v686, %v700
    %vm702 = vcmp.eq.s32.totalorder %v697, 2
    %v703 = vxor.u32 %v686, 2147483648
    %v704 = vsel %vm702, %v703, %v694
    %v705 = vsel %vm698, %v701, %v704
    %v706 = vsel %vm695, nan, %v705
    %v707 = vld [vmem:[%s3] sm:$0xff]
    %v708 = vld [vmem:[%s3 + $0x8] sm:$0xff]
    %v709 = vld [vmem:[%s3 + $0x10] sm:$0xff]
    %v710 = vld [vmem:[%s3 + $0x18] sm:$0xff]
    %v711 = vld [vmem:[%s4] sm:$0xff]
    %v712 = vld [vmem:[%s4 + $0x8] sm:$0xff]
    %v713 = vld [vmem:[%s4 + $0x10] sm:$0xff]
    %v714 = vld [vmem:[%s4 + $0x18] sm:$0xff]
    %716 = vset.pattern.permute.xlu0 0
    %717 = vperm.xlu0 %716, %v711
    %v718 = vpop.permute.xlu0 %717
    %721 = vset.pattern.permute.xlu0 0
    %722 = vperm.xlu0 %721, %v712
    %v723 = vpop.permute.xlu0 %722
    %726 = vset.pattern.permute.xlu0 0
    %727 = vperm.xlu0 %726, %v713
    %v728 = vpop.permute.xlu0 %727
    %731 = vset.pattern.permute.xlu0 0
    %732 = vperm.xlu0 %731, %v714
    %v733 = vpop.permute.xlu0 %732
    %vm735 = vcmask 261120
    %v737 = vsel %vm735, %v707, 0
    %v740 = vsel %vm735, %v708, 0
    %v743 = vsel %vm735, %v709, 0
    %v746 = vsel %vm735, %v710, 0
    %748 = vmatpush.msra.mxu0 0.0
    %749 = vmatpush.msra.mxu0 0.0
    %750 = vmatpush.msra.mxu0 0.0
    %751 = vmatpush.msra.mxu0 0.0
    %752 = vmatpush.msra.mxu0 0.0
    %753 = vmatpush.msra.mxu0 0.0
    %754 = vmatpush.msra.mxu0 0.0
    %755 = vmatpush.msra.mxu0 0.0
    %756 = vmatpush.msra.mxu0 0.0
    %757 = vmatpush.msra.mxu0 0.0
    %758 = vmatpush.msra.mxu0 0.0
    %759 = vmatpush.msra.mxu0 0.0
    %760 = vmatpush.msra.mxu0 %v706
    %761 = vmatpush.msra.mxu0 %v551
    %762 = vmatpush.msra.mxu0 %v396
    %763 = vmatpush.msra.mxu0 %v241
    %764 = vmatmul.f32.gmra.mxu0 %v737
    %v765 = vpop.f32.mrf.mxu0
    %v766 = vadd.f32 %v718, %v765
    %767 = vmatmul.f32.gmra.mxu0 %v740
    %v768 = vpop.f32.mrf.mxu0
    %v769 = vadd.f32 %v723, %v768
    %770 = vmatmul.f32.gmra.mxu0 %v743
    %v771 = vpop.f32.mrf.mxu0
    %v772 = vadd.f32 %v728, %v771
    %773 = vmatmul.f32.gmra.mxu0 %v746
    %v774 = vpop.f32.mrf.mxu0
    %v775 = vadd.f32 %v733, %v774
    %776 = vdwg.mxu0
    %v777 = vand.u32 2147483647, %v766
    %vm778 = vcmp.le.f32.partialorder %v777, 0.7853982
    %vm779 = vcmp.lt.s32.totalorder %v766, 0
    %v780 = vand.u32 %v766, 2139095040
    %v781 = vshrl.u32 %v780, 23
    %v782 = vsub.s32 %v781, 127
    %v783 = vand.u32 2147483647, %v766
    %v784 = vand.u32 %v783, 8388607
    %v785 = vor.u32 %v784, 8388608
    %v786 = vsub.s32 0, %v785
    %v787 = vadd.s32 %v782, 1
    %vm788 = vcmp.gt.s32.totalorder %v787, 0
    %v789 = vsel %vm788, %v787, 0
    %v790 = vshrl.u32 %v789, 5
    %v791 = vand.u32 %v789, 31
    %v792 = vsub.s32 32, %v791
    %v793 = vshrl.u32 683565275, %v792
    %v794 = vshll.u32 683565275, %v791
    %v795 = vshrl.u32 2475754826, %v792
    %v796 = vor.u32 %v794, %v795
    %v797 = vshll.u32 2475754826, %v791
    %v798 = vshrl.u32 2131351028, %v792
    %v799 = vor.u32 %v797, %v798
    %v800 = vshll.u32 2131351028, %v791
    %v801 = vshrl.u32 2102212464, %v792
    %v802 = vor.u32 %v800, %v801
    %v803 = vshll.u32 2102212464, %v791
    %v804 = vshrl.u32 920167782, %v792
    %v805 = vor.u32 %v803, %v804
    %v806 = vshll.u32 920167782, %v791
    %v807 = vshrl.u32 1326507024, %v792
    %v808 = vor.u32 %v806, %v807
    %vm809 = vcmp.lt.s32.totalorder %v790, 1
    %vm810 = vcmp.lt.s32.totalorder %v790, 2
    %vm811 = vcmp.lt.s32.totalorder %v790, 3
    %vm812 = vcmp.lt.s32.totalorder %v790, 4
    %v813 = vsel %vm809, %v793, %v796
    %v814 = vsel %vm812, %v802, 2102212464
    %v815 = vsel %vm811, %v799, %v814
    %v816 = vsel %vm810, %v813, %v815
    %v817 = vsel %vm809, %v796, %v799
    %v818 = vsel %vm812, %v805, 920167782
    %v819 = vsel %vm811, %v802, %v818
    %v820 = vsel %vm810, %v817, %v819
    %v821 = vsel %vm809, %v799, %v802
    %v822 = vsel %vm812, %v808, 1326507024
    %v823 = vsel %vm811, %v805, %v822
    %v824 = vsel %vm810, %v821, %v823
    %v825 = vshll.u32 %v785, 8
    %v826 = vand.u32 %v825, 65535
    %v827 = vshrl.u32 %v825, 16
    %v828 = vand.u32 %v824, 65535
    %v829 = vshrl.u32 %v824, 16
    %v830 = vmul.u32 %v826, %v828
    %v831 = vmul.u32 %v826, %v829
    %v832 = vmul.u32 %v827, %v828
    %v833 = vmul.u32 %v827, %v829
    %v834 = vshll.u32 %v831, 16
    %v835 = vshrl.u32 %v831, 16
    %v836 = vshll.u32 %v832, 16
    %v837 = vshrl.u32 %v832, 16
    %vm838 = vc.u32 %v830, %v834
    %v839 = vsel %vm838, 1, 0
    %v840 = vadd.s32 %v830, %v834
    %v841 = vadd.s32 %v833, %v839
    %vm842 = vc.u32 %v840, %v836
    %v843 = vsel %vm842, 1, 0
    %v844 = vadd.s32 %v840, %v836
    %v845 = vadd.s32 %v841, %v843
    %v846 = vadd.s32 %v845, %v835
    %v847 = vadd.s32 %v846, %v837
    %v848 = vand.u32 %v825, 65535
    %v849 = vshrl.u32 %v825, 16
    %v850 = vand.u32 %v820, 65535
    %v851 = vshrl.u32 %v820, 16
    %v852 = vmul.u32 %v848, %v850
    %v853 = vmul.u32 %v848, %v851
    %v854 = vmul.u32 %v849, %v850
    %v855 = vmul.u32 %v849, %v851
    %v856 = vshll.u32 %v853, 16
    %v857 = vshrl.u32 %v853, 16
    %v858 = vshll.u32 %v854, 16
    %v859 = vshrl.u32 %v854, 16
    %vm860 = vc.u32 %v852, %v856
    %v861 = vsel %vm860, 1, 0
    %v862 = vadd.s32 %v852, %v856
    %v863 = vadd.s32 %v855, %v861
    %vm864 = vc.u32 %v862, %v858
    %v865 = vsel %vm864, 1, 0
    %v866 = vadd.s32 %v862, %v858
    %v867 = vadd.s32 %v863, %v865
    %v868 = vadd.s32 %v867, %v857
    %v869 = vadd.s32 %v868, %v859
    %v870 = vmul.u32 %v825, %v816
    %v871 = vadd.s32 %v847, %v866
    %vm872 = vc.u32 %v847, %v866
    %v873 = vadd.s32 %v869, 1
    %v874 = vsel %vm872, %v873, %v869
    %v875 = vadd.s32 %v870, %v874
    %v876 = vadd.s32 %v875, 536870912
    %v877 = vshrl.u32 %v876, 30
    %v878 = vshll.u32 %v877, 30
    %v879 = vsub.s32 %v875, %v878
    %vm880 = vcmp.lt.s32.totalorder %v879, 0
    %v881 = vsub.s32 0, %v879
    %v882 = vsel %vm880, %v881, %v879
    %v883 = vclz %v882
    %v884 = vsub.s32 %v883, 2
    %vm885 = vcmp.gt.s32.totalorder 0, %v884
    %v886 = vsel %vm885, 0, %v884
    %v887 = vsub.s32 32, %v886
    %v888 = vshll.u32 %v879, %v886
    %v889 = vshrl.u32 %v871, %v887
    %v890 = vor.u32 %v888, %v889
    %v891 = vsub.s32 4294967266, %v886
    %v892 = vadd.s32 %v891, 127
    %v893 = vshll.u32 %v892, 23
    %v894 = vor.u32 4788187, %v893
    %v895 = vand.u32 2147483647, %v894
    %v897 = vcvt.s32.f32 %v890
    %v898 = vmul.f32 %v897, %v895
    %v899 = vxor.u32 %v898, 2147483648
    %v900 = vsel %vm779, %v899, %v898
    %v901 = vsub.s32 4, %v877
    %v902 = vsel %vm779, %v901, %v877
    %v903 = vsel %vm778, %v766, %v900
    %v904 = vsel %vm778, 0, %v902
    %v905 = vmul.f32 %v903, %v903
    %v906 = vmul.f32 %v905, -0.001358992
    %v907 = vadd.f32 %v906, 0.041655596
    %v908 = vmul.f32 %v905, %v907
    %v909 = vadd.f32 %v908, -0.4999988
    %v910 = vmul.f32 %v905, %v909
    %v911 = vadd.f32 1.0, %v910
    %v912 = vmul.f32 %v903, %v903
    %v913 = vmul.f32 %v912, -0.00019511016
    %v914 = vadd.f32 %v913, 0.008332121
    %v915 = vmul.f32 %v912, %v914
    %v916 = vadd.f32 %v915, -0.16666654
    %v917 = vmul.f32 %v912, %v916
    %v918 = vadd.f32 %v917, 1.0
    %v919 = vmul.f32 %v918, %v903
    %vm920 = vweird.f32 %v766
    %v921 = vadd.s32 %v904, 3
    %v922 = vand.u32 %v921, 3
    %vm923 = vcmp.lt.s32.totalorder %v922, 2
    %vm924 = vcmp.eq.s32.totalorder %v922, 0
    %v925 = vxor.u32 %v919, 2147483648
    %v926 = vsel %vm924, %v911, %v925
    %vm927 = vcmp.eq.s32.totalorder %v922, 2
    %v928 = vxor.u32 %v911, 2147483648
    %v929 = vsel %vm927, %v928, %v919
    %v930 = vsel %vm923, %v926, %v929
    %v931 = vsel %vm920, nan, %v930
    %v932 = vand.u32 2147483647, %v769
    %vm933 = vcmp.le.f32.partialorder %v932, 0.7853982
    %vm934 = vcmp.lt.s32.totalorder %v769, 0
    %v935 = vand.u32 %v769, 2139095040
    %v936 = vshrl.u32 %v935, 23
    %v937 = vsub.s32 %v936, 127
    %v938 = vand.u32 2147483647, %v769
    %v939 = vand.u32 %v938, 8388607
    %v940 = vor.u32 %v939, 8388608
    %v941 = vsub.s32 0, %v940
    %v942 = vadd.s32 %v937, 1
    %vm943 = vcmp.gt.s32.totalorder %v942, 0
    %v944 = vsel %vm943, %v942, 0
    %v945 = vshrl.u32 %v944, 5
    %v946 = vand.u32 %v944, 31
    %v947 = vsub.s32 32, %v946
    %v948 = vshrl.u32 683565275, %v947
    %v949 = vshll.u32 683565275, %v946
    %v950 = vshrl.u32 2475754826, %v947
    %v951 = vor.u32 %v949, %v950
    %v952 = vshll.u32 2475754826, %v946
    %v953 = vshrl.u32 2131351028, %v947
    %v954 = vor.u32 %v952, %v953
    %v955 = vshll.u32 2131351028, %v946
    %v956 = vshrl.u32 2102212464, %v947
    %v957 = vor.u32 %v955, %v956
    %v958 = vshll.u32 2102212464, %v946
    %v959 = vshrl.u32 920167782, %v947
    %v960 = vor.u32 %v958, %v959
    %v961 = vshll.u32 920167782, %v946
    %v962 = vshrl.u32 1326507024, %v947
    %v963 = vor.u32 %v961, %v962
    %vm964 = vcmp.lt.s32.totalorder %v945, 1
    %vm965 = vcmp.lt.s32.totalorder %v945, 2
    %vm966 = vcmp.lt.s32.totalorder %v945, 3
    %vm967 = vcmp.lt.s32.totalorder %v945, 4
    %v968 = vsel %vm964, %v948, %v951
    %v969 = vsel %vm967, %v957, 2102212464
    %v970 = vsel %vm966, %v954, %v969
    %v971 = vsel %vm965, %v968, %v970
    %v972 = vsel %vm964, %v951, %v954
    %v973 = vsel %vm967, %v960, 920167782
    %v974 = vsel %vm966, %v957, %v973
    %v975 = vsel %vm965, %v972, %v974
    %v976 = vsel %vm964, %v954, %v957
    %v977 = vsel %vm967, %v963, 1326507024
    %v978 = vsel %vm966, %v960, %v977
    %v979 = vsel %vm965, %v976, %v978
    %v980 = vshll.u32 %v940, 8
    %v981 = vand.u32 %v980, 65535
    %v982 = vshrl.u32 %v980, 16
    %v983 = vand.u32 %v979, 65535
    %v984 = vshrl.u32 %v979, 16
    %v985 = vmul.u32 %v981, %v983
    %v986 = vmul.u32 %v981, %v984
    %v987 = vmul.u32 %v982, %v983
    %v988 = vmul.u32 %v982, %v984
    %v989 = vshll.u32 %v986, 16
    %v990 = vshrl.u32 %v986, 16
    %v991 = vshll.u32 %v987, 16
    %v992 = vshrl.u32 %v987, 16
    %vm993 = vc.u32 %v985, %v989
    %v994 = vsel %vm993, 1, 0
    %v995 = vadd.s32 %v985, %v989
    %v996 = vadd.s32 %v988, %v994
    %vm997 = vc.u32 %v995, %v991
    %v998 = vsel %vm997, 1, 0
    %v999 = vadd.s32 %v995, %v991
    %v1000 = vadd.s32 %v996, %v998
    %v1001 = vadd.s32 %v1000, %v990
    %v1002 = vadd.s32 %v1001, %v992
    %v1003 = vand.u32 %v980, 65535
    %v1004 = vshrl.u32 %v980, 16
    %v1005 = vand.u32 %v975, 65535
    %v1006 = vshrl.u32 %v975, 16
    %v1007 = vmul.u32 %v1003, %v1005
    %v1008 = vmul.u32 %v1003, %v1006
    %v1009 = vmul.u32 %v1004, %v1005
    %v1010 = vmul.u32 %v1004, %v1006
    %v1011 = vshll.u32 %v1008, 16
    %v1012 = vshrl.u32 %v1008, 16
    %v1013 = vshll.u32 %v1009, 16
    %v1014 = vshrl.u32 %v1009, 16
    %vm1015 = vc.u32 %v1007, %v1011
    %v1016 = vsel %vm1015, 1, 0
    %v1017 = vadd.s32 %v1007, %v1011
    %v1018 = vadd.s32 %v1010, %v1016
    %vm1019 = vc.u32 %v1017, %v1013
    %v1020 = vsel %vm1019, 1, 0
    %v1021 = vadd.s32 %v1017, %v1013
    %v1022 = vadd.s32 %v1018, %v1020
    %v1023 = vadd.s32 %v1022, %v1012
    %v1024 = vadd.s32 %v1023, %v1014
    %v1025 = vmul.u32 %v980, %v971
    %v1026 = vadd.s32 %v1002, %v1021
    %vm1027 = vc.u32 %v1002, %v1021
    %v1028 = vadd.s32 %v1024, 1
    %v1029 = vsel %vm1027, %v1028, %v1024
    %v1030 = vadd.s32 %v1025, %v1029
    %v1031 = vadd.s32 %v1030, 536870912
    %v1032 = vshrl.u32 %v1031, 30
    %v1033 = vshll.u32 %v1032, 30
    %v1034 = vsub.s32 %v1030, %v1033
    %vm1035 = vcmp.lt.s32.totalorder %v1034, 0
    %v1036 = vsub.s32 0, %v1034
    %v1037 = vsel %vm1035, %v1036, %v1034
    %v1038 = vclz %v1037
    %v1039 = vsub.s32 %v1038, 2
    %vm1040 = vcmp.gt.s32.totalorder 0, %v1039
    %v1041 = vsel %vm1040, 0, %v1039
    %v1042 = vsub.s32 32, %v1041
    %v1043 = vshll.u32 %v1034, %v1041
    %v1044 = vshrl.u32 %v1026, %v1042
    %v1045 = vor.u32 %v1043, %v1044
    %v1046 = vsub.s32 4294967266, %v1041
    %v1047 = vadd.s32 %v1046, 127
    %v1048 = vshll.u32 %v1047, 23
    %v1049 = vor.u32 4788187, %v1048
    %v1050 = vand.u32 2147483647, %v1049
    %v1052 = vcvt.s32.f32 %v1045
    %v1053 = vmul.f32 %v1052, %v1050
    %v1054 = vxor.u32 %v1053, 2147483648
    %v1055 = vsel %vm934, %v1054, %v1053
    %v1056 = vsub.s32 4, %v1032
    %v1057 = vsel %vm934, %v1056, %v1032
    %v1058 = vsel %vm933, %v769, %v1055
    %v1059 = vsel %vm933, 0, %v1057
    %v1060 = vmul.f32 %v1058, %v1058
    %v1061 = vmul.f32 %v1060, -0.001358992
    %v1062 = vadd.f32 %v1061, 0.041655596
    %v1063 = vmul.f32 %v1060, %v1062
    %v1064 = vadd.f32 %v1063, -0.4999988
    %v1065 = vmul.f32 %v1060, %v1064
    %v1066 = vadd.f32 1.0, %v1065
    %v1067 = vmul.f32 %v1058, %v1058
    %v1068 = vmul.f32 %v1067, -0.00019511016
    %v1069 = vadd.f32 %v1068, 0.008332121
    %v1070 = vmul.f32 %v1067, %v1069
    %v1071 = vadd.f32 %v1070, -0.16666654
    %v1072 = vmul.f32 %v1067, %v1071
    %v1073 = vadd.f32 %v1072, 1.0
    %v1074 = vmul.f32 %v1073, %v1058
    %vm1075 = vweird.f32 %v769
    %v1076 = vadd.s32 %v1059, 3
    %v1077 = vand.u32 %v1076, 3
    %vm1078 = vcmp.lt.s32.totalorder %v1077, 2
    %vm1079 = vcmp.eq.s32.totalorder %v1077, 0
    %v1080 = vxor.u32 %v1074, 2147483648
    %v1081 = vsel %vm1079, %v1066, %v1080
    %vm1082 = vcmp.eq.s32.totalorder %v1077, 2
    %v1083 = vxor.u32 %v1066, 2147483648
    %v1084 = vsel %vm1082, %v1083, %v1074
    %v1085 = vsel %vm1078, %v1081, %v1084
    %v1086 = vsel %vm1075, nan, %v1085
    %v1087 = vand.u32 2147483647, %v772
    %vm1088 = vcmp.le.f32.partialorder %v1087, 0.7853982
    %vm1089 = vcmp.lt.s32.totalorder %v772, 0
    %v1090 = vand.u32 %v772, 2139095040
    %v1091 = vshrl.u32 %v1090, 23
    %v1092 = vsub.s32 %v1091, 127
    %v1093 = vand.u32 2147483647, %v772
    %v1094 = vand.u32 %v1093, 8388607
    %v1095 = vor.u32 %v1094, 8388608
    %v1096 = vsub.s32 0, %v1095
    %v1097 = vadd.s32 %v1092, 1
    %vm1098 = vcmp.gt.s32.totalorder %v1097, 0
    %v1099 = vsel %vm1098, %v1097, 0
    %v1100 = vshrl.u32 %v1099, 5
    %v1101 = vand.u32 %v1099, 31
    %v1102 = vsub.s32 32, %v1101
    %v1103 = vshrl.u32 683565275, %v1102
    %v1104 = vshll.u32 683565275, %v1101
    %v1105 = vshrl.u32 2475754826, %v1102
    %v1106 = vor.u32 %v1104, %v1105
    %v1107 = vshll.u32 2475754826, %v1101
    %v1108 = vshrl.u32 2131351028, %v1102
    %v1109 = vor.u32 %v1107, %v1108
    %v1110 = vshll.u32 2131351028, %v1101
    %v1111 = vshrl.u32 2102212464, %v1102
    %v1112 = vor.u32 %v1110, %v1111
    %v1113 = vshll.u32 2102212464, %v1101
    %v1114 = vshrl.u32 920167782, %v1102
    %v1115 = vor.u32 %v1113, %v1114
    %v1116 = vshll.u32 920167782, %v1101
    %v1117 = vshrl.u32 1326507024, %v1102
    %v1118 = vor.u32 %v1116, %v1117
    %vm1119 = vcmp.lt.s32.totalorder %v1100, 1
    %vm1120 = vcmp.lt.s32.totalorder %v1100, 2
    %vm1121 = vcmp.lt.s32.totalorder %v1100, 3
    %vm1122 = vcmp.lt.s32.totalorder %v1100, 4
    %v1123 = vsel %vm1119, %v1103, %v1106
    %v1124 = vsel %vm1122, %v1112, 2102212464
    %v1125 = vsel %vm1121, %v1109, %v1124
    %v1126 = vsel %vm1120, %v1123, %v1125
    %v1127 = vsel %vm1119, %v1106, %v1109
    %v1128 = vsel %vm1122, %v1115, 920167782
    %v1129 = vsel %vm1121, %v1112, %v1128
    %v1130 = vsel %vm1120, %v1127, %v1129
    %v1131 = vsel %vm1119, %v1109, %v1112
    %v1132 = vsel %vm1122, %v1118, 1326507024
    %v1133 = vsel %vm1121, %v1115, %v1132
    %v1134 = vsel %vm1120, %v1131, %v1133
    %v1135 = vshll.u32 %v1095, 8
    %v1136 = vand.u32 %v1135, 65535
    %v1137 = vshrl.u32 %v1135, 16
    %v1138 = vand.u32 %v1134, 65535
    %v1139 = vshrl.u32 %v1134, 16
    %v1140 = vmul.u32 %v1136, %v1138
    %v1141 = vmul.u32 %v1136, %v1139
    %v1142 = vmul.u32 %v1137, %v1138
    %v1143 = vmul.u32 %v1137, %v1139
    %v1144 = vshll.u32 %v1141, 16
    %v1145 = vshrl.u32 %v1141, 16
    %v1146 = vshll.u32 %v1142, 16
    %v1147 = vshrl.u32 %v1142, 16
    %vm1148 = vc.u32 %v1140, %v1144
    %v1149 = vsel %vm1148, 1, 0
    %v1150 = vadd.s32 %v1140, %v1144
    %v1151 = vadd.s32 %v1143, %v1149
    %vm1152 = vc.u32 %v1150, %v1146
    %v1153 = vsel %vm1152, 1, 0
    %v1154 = vadd.s32 %v1150, %v1146
    %v1155 = vadd.s32 %v1151, %v1153
    %v1156 = vadd.s32 %v1155, %v1145
    %v1157 = vadd.s32 %v1156, %v1147
    %v1158 = vand.u32 %v1135, 65535
    %v1159 = vshrl.u32 %v1135, 16
    %v1160 = vand.u32 %v1130, 65535
    %v1161 = vshrl.u32 %v1130, 16
    %v1162 = vmul.u32 %v1158, %v1160
    %v1163 = vmul.u32 %v1158, %v1161
    %v1164 = vmul.u32 %v1159, %v1160
    %v1165 = vmul.u32 %v1159, %v1161
    %v1166 = vshll.u32 %v1163, 16
    %v1167 = vshrl.u32 %v1163, 16
    %v1168 = vshll.u32 %v1164, 16
    %v1169 = vshrl.u32 %v1164, 16
    %vm1170 = vc.u32 %v1162, %v1166
    %v1171 = vsel %vm1170, 1, 0
    %v1172 = vadd.s32 %v1162, %v1166
    %v1173 = vadd.s32 %v1165, %v1171
    %vm1174 = vc.u32 %v1172, %v1168
    %v1175 = vsel %vm1174, 1, 0
    %v1176 = vadd.s32 %v1172, %v1168
    %v1177 = vadd.s32 %v1173, %v1175
    %v1178 = vadd.s32 %v1177, %v1167
    %v1179 = vadd.s32 %v1178, %v1169
    %v1180 = vmul.u32 %v1135, %v1126
    %v1181 = vadd.s32 %v1157, %v1176
    %vm1182 = vc.u32 %v1157, %v1176
    %v1183 = vadd.s32 %v1179, 1
    %v1184 = vsel %vm1182, %v1183, %v1179
    %v1185 = vadd.s32 %v1180, %v1184
    %v1186 = vadd.s32 %v1185, 536870912
    %v1187 = vshrl.u32 %v1186, 30
    %v1188 = vshll.u32 %v1187, 30
    %v1189 = vsub.s32 %v1185, %v1188
    %vm1190 = vcmp.lt.s32.totalorder %v1189, 0
    %v1191 = vsub.s32 0, %v1189
    %v1192 = vsel %vm1190, %v1191, %v1189
    %v1193 = vclz %v1192
    %v1194 = vsub.s32 %v1193, 2
    %vm1195 = vcmp.gt.s32.totalorder 0, %v1194
    %v1196 = vsel %vm1195, 0, %v1194
    %v1197 = vsub.s32 32, %v1196
    %v1198 = vshll.u32 %v1189, %v1196
    %v1199 = vshrl.u32 %v1181, %v1197
    %v1200 = vor.u32 %v1198, %v1199
    %v1201 = vsub.s32 4294967266, %v1196
    %v1202 = vadd.s32 %v1201, 127
    %v1203 = vshll.u32 %v1202, 23
    %v1204 = vor.u32 4788187, %v1203
    %v1205 = vand.u32 2147483647, %v1204
    %v1207 = vcvt.s32.f32 %v1200
    %v1208 = vmul.f32 %v1207, %v1205
    %v1209 = vxor.u32 %v1208, 2147483648
    %v1210 = vsel %vm1089, %v1209, %v1208
    %v1211 = vsub.s32 4, %v1187
    %v1212 = vsel %vm1089, %v1211, %v1187
    %v1213 = vsel %vm1088, %v772, %v1210
    %v1214 = vsel %vm1088, 0, %v1212
    %v1215 = vmul.f32 %v1213, %v1213
    %v1216 = vmul.f32 %v1215, -0.001358992
    %v1217 = vadd.f32 %v1216, 0.041655596
    %v1218 = vmul.f32 %v1215, %v1217
    %v1219 = vadd.f32 %v1218, -0.4999988
    %v1220 = vmul.f32 %v1215, %v1219
    %v1221 = vadd.f32 1.0, %v1220
    %v1222 = vmul.f32 %v1213, %v1213
    %v1223 = vmul.f32 %v1222, -0.00019511016
    %v1224 = vadd.f32 %v1223, 0.008332121
    %v1225 = vmul.f32 %v1222, %v1224
    %v1226 = vadd.f32 %v1225, -0.16666654
    %v1227 = vmul.f32 %v1222, %v1226
    %v1228 = vadd.f32 %v1227, 1.0
    %v1229 = vmul.f32 %v1228, %v1213
    %vm1230 = vweird.f32 %v772
    %v1231 = vadd.s32 %v1214, 3
    %v1232 = vand.u32 %v1231, 3
    %vm1233 = vcmp.lt.s32.totalorder %v1232, 2
    %vm1234 = vcmp.eq.s32.totalorder %v1232, 0
    %v1235 = vxor.u32 %v1229, 2147483648
    %v1236 = vsel %vm1234, %v1221, %v1235
    %vm1237 = vcmp.eq.s32.totalorder %v1232, 2
    %v1238 = vxor.u32 %v1221, 2147483648
    %v1239 = vsel %vm1237, %v1238, %v1229
    %v1240 = vsel %vm1233, %v1236, %v1239
    %v1241 = vsel %vm1230, nan, %v1240
    %v1242 = vand.u32 2147483647, %v775
    %vm1243 = vcmp.le.f32.partialorder %v1242, 0.7853982
    %vm1244 = vcmp.lt.s32.totalorder %v775, 0
    %v1245 = vand.u32 %v775, 2139095040
    %v1246 = vshrl.u32 %v1245, 23
    %v1247 = vsub.s32 %v1246, 127
    %v1248 = vand.u32 2147483647, %v775
    %v1249 = vand.u32 %v1248, 8388607
    %v1250 = vor.u32 %v1249, 8388608
    %v1251 = vsub.s32 0, %v1250
    %v1252 = vadd.s32 %v1247, 1
    %vm1253 = vcmp.gt.s32.totalorder %v1252, 0
    %v1254 = vsel %vm1253, %v1252, 0
    %v1255 = vshrl.u32 %v1254, 5
    %v1256 = vand.u32 %v1254, 31
    %v1257 = vsub.s32 32, %v1256
    %v1258 = vshrl.u32 683565275, %v1257
    %v1259 = vshll.u32 683565275, %v1256
    %v1260 = vshrl.u32 2475754826, %v1257
    %v1261 = vor.u32 %v1259, %v1260
    %v1262 = vshll.u32 2475754826, %v1256
    %v1263 = vshrl.u32 2131351028, %v1257
    %v1264 = vor.u32 %v1262, %v1263
    %v1265 = vshll.u32 2131351028, %v1256
    %v1266 = vshrl.u32 2102212464, %v1257
    %v1267 = vor.u32 %v1265, %v1266
    %v1268 = vshll.u32 2102212464, %v1256
    %v1269 = vshrl.u32 920167782, %v1257
    %v1270 = vor.u32 %v1268, %v1269
    %v1271 = vshll.u32 920167782, %v1256
    %v1272 = vshrl.u32 1326507024, %v1257
    %v1273 = vor.u32 %v1271, %v1272
    %vm1274 = vcmp.lt.s32.totalorder %v1255, 1
    %vm1275 = vcmp.lt.s32.totalorder %v1255, 2
    %vm1276 = vcmp.lt.s32.totalorder %v1255, 3
    %vm1277 = vcmp.lt.s32.totalorder %v1255, 4
    %v1278 = vsel %vm1274, %v1258, %v1261
    %v1279 = vsel %vm1277, %v1267, 2102212464
    %v1280 = vsel %vm1276, %v1264, %v1279
    %v1281 = vsel %vm1275, %v1278, %v1280
    %v1282 = vsel %vm1274, %v1261, %v1264
    %v1283 = vsel %vm1277, %v1270, 920167782
    %v1284 = vsel %vm1276, %v1267, %v1283
    %v1285 = vsel %vm1275, %v1282, %v1284
    %v1286 = vsel %vm1274, %v1264, %v1267
    %v1287 = vsel %vm1277, %v1273, 1326507024
    %v1288 = vsel %vm1276, %v1270, %v1287
    %v1289 = vsel %vm1275, %v1286, %v1288
    %v1290 = vshll.u32 %v1250, 8
    %v1291 = vand.u32 %v1290, 65535
    %v1292 = vshrl.u32 %v1290, 16
    %v1293 = vand.u32 %v1289, 65535
    %v1294 = vshrl.u32 %v1289, 16
    %v1295 = vmul.u32 %v1291, %v1293
    %v1296 = vmul.u32 %v1291, %v1294
    %v1297 = vmul.u32 %v1292, %v1293
    %v1298 = vmul.u32 %v1292, %v1294
    %v1299 = vshll.u32 %v1296, 16
    %v1300 = vshrl.u32 %v1296, 16
    %v1301 = vshll.u32 %v1297, 16
    %v1302 = vshrl.u32 %v1297, 16
    %vm1303 = vc.u32 %v1295, %v1299
    %v1304 = vsel %vm1303, 1, 0
    %v1305 = vadd.s32 %v1295, %v1299
    %v1306 = vadd.s32 %v1298, %v1304
    %vm1307 = vc.u32 %v1305, %v1301
    %v1308 = vsel %vm1307, 1, 0
    %v1309 = vadd.s32 %v1305, %v1301
    %v1310 = vadd.s32 %v1306, %v1308
    %v1311 = vadd.s32 %v1310, %v1300
    %v1312 = vadd.s32 %v1311, %v1302
    %v1313 = vand.u32 %v1290, 65535
    %v1314 = vshrl.u32 %v1290, 16
    %v1315 = vand.u32 %v1285, 65535
    %v1316 = vshrl.u32 %v1285, 16
    %v1317 = vmul.u32 %v1313, %v1315
    %v1318 = vmul.u32 %v1313, %v1316
    %v1319 = vmul.u32 %v1314, %v1315
    %v1320 = vmul.u32 %v1314, %v1316
    %v1321 = vshll.u32 %v1318, 16
    %v1322 = vshrl.u32 %v1318, 16
    %v1323 = vshll.u32 %v1319, 16
    %v1324 = vshrl.u32 %v1319, 16
    %vm1325 = vc.u32 %v1317, %v1321
    %v1326 = vsel %vm1325, 1, 0
    %v1327 = vadd.s32 %v1317, %v1321
    %v1328 = vadd.s32 %v1320, %v1326
    %vm1329 = vc.u32 %v1327, %v1323
    %v1330 = vsel %vm1329, 1, 0
    %v1331 = vadd.s32 %v1327, %v1323
    %v1332 = vadd.s32 %v1328, %v1330
    %v1333 = vadd.s32 %v1332, %v1322
    %v1334 = vadd.s32 %v1333, %v1324
    %v1335 = vmul.u32 %v1290, %v1281
    %v1336 = vadd.s32 %v1312, %v1331
    %vm1337 = vc.u32 %v1312, %v1331
    %v1338 = vadd.s32 %v1334, 1
    %v1339 = vsel %vm1337, %v1338, %v1334
    %v1340 = vadd.s32 %v1335, %v1339
    %v1341 = vadd.s32 %v1340, 536870912
    %v1342 = vshrl.u32 %v1341, 30
    %v1343 = vshll.u32 %v1342, 30
    %v1344 = vsub.s32 %v1340, %v1343
    %vm1345 = vcmp.lt.s32.totalorder %v1344, 0
    %v1346 = vsub.s32 0, %v1344
    %v1347 = vsel %vm1345, %v1346, %v1344
    %v1348 = vclz %v1347
    %v1349 = vsub.s32 %v1348, 2
    %vm1350 = vcmp.gt.s32.totalorder 0, %v1349
    %v1351 = vsel %vm1350, 0, %v1349
    %v1352 = vsub.s32 32, %v1351
    %v1353 = vshll.u32 %v1344, %v1351
    %v1354 = vshrl.u32 %v1336, %v1352
    %v1355 = vor.u32 %v1353, %v1354
    %v1356 = vsub.s32 4294967266, %v1351
    %v1357 = vadd.s32 %v1356, 127
    %v1358 = vshll.u32 %v1357, 23
    %v1359 = vor.u32 4788187, %v1358
    %v1360 = vand.u32 2147483647, %v1359
    %v1362 = vcvt.s32.f32 %v1355
    %v1363 = vmul.f32 %v1362, %v1360
    %v1364 = vxor.u32 %v1363, 2147483648
    %v1365 = vsel %vm1244, %v1364, %v1363
    %v1366 = vsub.s32 4, %v1342
    %v1367 = vsel %vm1244, %v1366, %v1342
    %v1368 = vsel %vm1243, %v775, %v1365
    %v1369 = vsel %vm1243, 0, %v1367
    %v1370 = vmul.f32 %v1368, %v1368
    %v1371 = vmul.f32 %v1370, -0.001358992
    %v1372 = vadd.f32 %v1371, 0.041655596
    %v1373 = vmul.f32 %v1370, %v1372
    %v1374 = vadd.f32 %v1373, -0.4999988
    %v1375 = vmul.f32 %v1370, %v1374
    %v1376 = vadd.f32 1.0, %v1375
    %v1377 = vmul.f32 %v1368, %v1368
    %v1378 = vmul.f32 %v1377, -0.00019511016
    %v1379 = vadd.f32 %v1378, 0.008332121
    %v1380 = vmul.f32 %v1377, %v1379
    %v1381 = vadd.f32 %v1380, -0.16666654
    %v1382 = vmul.f32 %v1377, %v1381
    %v1383 = vadd.f32 %v1382, 1.0
    %v1384 = vmul.f32 %v1383, %v1368
    %vm1385 = vweird.f32 %v775
    %v1386 = vadd.s32 %v1369, 3
    %v1387 = vand.u32 %v1386, 3
    %vm1388 = vcmp.lt.s32.totalorder %v1387, 2
    %vm1389 = vcmp.eq.s32.totalorder %v1387, 0
    %v1390 = vxor.u32 %v1384, 2147483648
    %v1391 = vsel %vm1389, %v1376, %v1390
    %vm1392 = vcmp.eq.s32.totalorder %v1387, 2
    %v1393 = vxor.u32 %v1376, 2147483648
    %v1394 = vsel %vm1392, %v1393, %v1384
    %v1395 = vsel %vm1388, %v1391, %v1394
    %v1396 = vsel %vm1385, nan, %v1395
    %v1397 = vld [vmem:[%s5] sm:$0x3]
    %v1398 = vld [vmem:[%s6] sm:$0x3]
    %1400 = vset.pattern.permute.xlu0 0
    %1401 = vperm.xlu0 %1400, %v1398
    %v1402 = vpop.permute.xlu0 %1401
    %v1405 = vsel %vm735, %v1397, 0
    %1407 = vmatpush.msra.mxu0 0.0
    %1408 = vmatpush.msra.mxu0 0.0
    %1409 = vmatpush.msra.mxu0 0.0
    %1410 = vmatpush.msra.mxu0 0.0
    %1411 = vmatpush.msra.mxu0 0.0
    %1412 = vmatpush.msra.mxu0 0.0
    %1413 = vmatpush.msra.mxu0 0.0
    %1414 = vmatpush.msra.mxu0 0.0
    %1415 = vmatpush.msra.mxu0 0.0
    %1416 = vmatpush.msra.mxu0 0.0
    %1417 = vmatpush.msra.mxu0 0.0
    %1418 = vmatpush.msra.mxu0 0.0
    %1419 = vmatpush.msra.mxu0 %v1396
    %1420 = vmatpush.msra.mxu0 %v1241
    %1421 = vmatpush.msra.mxu0 %v1086
    %1422 = vmatpush.msra.mxu0 %v931
    %1423 = vmatmul.f32.gmra.mxu0 %v1405
    %v1424 = vpop.f32.mrf.mxu0
    %v1425 = vadd.f32 %v1402, %v1424
    %1426 = vdwg.mxu0
    %1427 = vst [vmem:[#allocation2] sm:$0x3] %v1425
    // Predicated region
    $region30: #{tpu_custom_call.1} parent=1 // pred_check
      _
    $region31: #{tpu_custom_call.1} parent=1 // pred_check_branch
      %1429 = sbr.rel (0) target = $region33
    $region32: #{tpu_custom_call.1} parent=1 // pred_region
      %1431 = vsyncadd [#allocation3], 0
      %s1433 = sshll.u32 [#allocation2], 4
      %s1434 = int_to_ptr.vmem [resolvable:$true] %s1433
      %s1435 = sshll.u32 %s7, 4
      %s1436 = int_to_ptr.hbm [resolvable:$true] %s1435
      %1438 = dma.vmem_to_hbm [thread:$0]  %s1434, 32, %s1436, [#allocation3]
    $region33: #{tpu_custom_call.1} parent=1 // pred_fallthru
      _
    // Predicated region
    $region34: #{tpu_custom_call.1} parent=1 // pred_check
      _
    $region35: #{tpu_custom_call.1} parent=1 // pred_check_branch
      %1440 = sbr.rel (0) target = $region37
    $region36: #{tpu_custom_call.1} parent=1 // pred_region
      %1442 = dma.done [#allocation3], 32
    $region37: #{tpu_custom_call.1} parent=1 // pred_fallthru
      _
    %1443 = vsyncpa [#allocation3], 1

</llo_original>
